<compile_context>
chip_gen: v6e
topology: v6e:2x2x1
jax: 0.10.0
libtpu: 0.0.40
codegen_flags: <defaults>
</compile_context>

<pallas_src>
import math

import jax
import jax.numpy as jnp
from jax import lax
from jax.experimental import pallas as pl
from jax.experimental.pallas import tpu as pltpu


# ---------------------------------------------------------------------------
# VMEM budget (generation aware)
# ---------------------------------------------------------------------------

_VMEM_LIMIT_CACHE = None


def _vmem_limit_bytes():
    """~75% of physical VMEM, capped at 96 MiB (=> ~48 MiB on v7x, 96 MiB on v5e/v6e)."""
    global _VMEM_LIMIT_CACHE
    if _VMEM_LIMIT_CACHE is None:
        try:
            cap = int(pltpu.get_tpu_info().vmem_capacity_bytes)
        except Exception:
            cap = 64 * 1024 * 1024  # conservative fallback (v7x physical per-TC VMEM)
        _VMEM_LIMIT_CACHE = max(16 * 1024 * 1024,
                                min(96 * 1024 * 1024, (cap * 3) // 4))
    return _VMEM_LIMIT_CACHE


def _round_up(x, m):
    return ((x + m - 1) // m) * m


def _pick_tile(dim, cap, aligns=(256, 128, 8)):
    """Largest tile <= cap dividing `dim`, preferring MXU-friendly (256) alignment.
    Returns None if no aligned divisor exists (caller decides padding / full-dim)."""
    if dim <= cap:
        return dim
    for align in aligns:
        t = (cap // align) * align
        while t >= align:
            if dim % t == 0:
                return t
            t -= align
    return None


# ---------------------------------------------------------------------------
# Tiled linear kernel:  y = x @ W + b   (bf16 MXU inputs, f32 accumulation)
# ---------------------------------------------------------------------------

def _linear_kernel(x_ref, w_ref, b_ref, o_ref, acc_ref):
    k = pl.program_id(2)

    @pl.when(k == 0)
    def _():
        acc_ref[...] = jnp.zeros_like(acc_ref)

    acc_ref[...] += jnp.dot(x_ref[...], w_ref[...],
                            preferred_element_type=jnp.float32)

    @pl.when(k == pl.num_programs(2) - 1)
    def _():
        o_ref[...] = (acc_ref[...] + b_ref[...].astype(jnp.float32)).astype(o_ref.dtype)


def pallas_linear(x2d, w, b, *, out_dtype=jnp.float32,
                  tm_cap=512, tn_cap=512, tk_cap=1024):
    """x2d: (M, K) bf16, w: (K, N) bf16, b: (N,) f32 -> (M, N) out_dtype."""
    M0, K = x2d.shape
    K2, N = w.shape
    assert K == K2

    M = M0
    tm = _pick_tile(M, tm_cap)
    if tm is None:
        # Awkward M (e.g. odd B*T): pad rows to a multiple of 128 instead of silently
        # using a huge full-M block (keeps stores aligned and VMEM bounded).
        M = _round_up(M0, 128)
        x2d = jnp.pad(x2d, ((0, M - M0), (0, 0)))
        tm = _pick_tile(M, tm_cap)
    # Weight dims are model dims; a full-dim block is always layout-legal.
    tn = _pick_tile(N, tn_cap) or N
    tk = _pick_tile(K, tk_cap) or K

    b2d = b.reshape(1, N).astype(jnp.float32)

    ce = pl.CostEstimate(
        flops=2 * M * K * N,
        transcendentals=0,
        bytes_accessed=(M * K * x2d.dtype.itemsize
                        + K * N * w.dtype.itemsize
                        + N * 4
                        + M * N * jnp.dtype(out_dtype).itemsize))

    y = pl.pallas_call(
        _linear_kernel,
        out_shape=jax.ShapeDtypeStruct((M, N), out_dtype),
        grid_spec=pltpu.PrefetchScalarGridSpec(
            num_scalar_prefetch=0,
            grid=(M // tm, N // tn, K // tk),
            in_specs=[
                pl.BlockSpec((tm, tk), lambda i, j, k: (i, k)),
                pl.BlockSpec((tk, tn), lambda i, j, k: (k, j)),
                pl.BlockSpec((1, tn), lambda i, j, k: (0, j)),
            ],
            out_specs=pl.BlockSpec((tm, tn), lambda i, j, k: (i, j)),
            scratch_shapes=[pltpu.VMEM((tm, tn), jnp.float32)]),
        compiler_params=pltpu.CompilerParams(
            dimension_semantics=("parallel", "parallel", "arbitrary"),
            vmem_limit_bytes=_vmem_limit_bytes()),
        cost_estimate=ce,
    )(x2d, w, b2d)
    return y if M == M0 else y[:M0]


# ---------------------------------------------------------------------------
# Attention kernel: one batch element per grid step, head split fused in-kernel.
# Reads the (1, T, 3*D) qkv row block directly (no host-side head transposes) and
# writes a lane-dense (1, T, D) context block.
# ---------------------------------------------------------------------------

def _make_attention_kernel(num_heads, head_dim, scale, return_weights):
    D = num_heads * head_dim

    def kernel(qkv_ref, o_ref, *w_out):
        x = qkv_ref[0]  # (T, 3*D) bf16 — whole batch-element row, resident in VMEM
        for h in range(num_heads):  # static unroll over heads
            c0 = h * head_dim
            q = x[:, c0:c0 + head_dim]                    # (T, hd) bf16
            k = x[:, D + c0:D + c0 + head_dim]            # (T, hd) bf16
            v = x[:, 2 * D + c0:2 * D + c0 + head_dim]    # (T, hd) bf16

            # scores: contract head_dim of q and k (no explicit k.T relayout)
            s = lax.dot_general(q, k, (((1,), (1,)), ((), ())),
                                preferred_element_type=jnp.float32) * scale  # (T, T)

            # numerically stable softmax in f32
            m = jnp.max(s, axis=-1, keepdims=True)
            p = jnp.exp(s - m)
            denom = jnp.sum(p, axis=-1, keepdims=True)
            if return_weights:
                w = p / denom  # exact division => rows sum to 1 (PyTorch parity)
                w_out[0][0, h] = w.astype(w_out[0].dtype)
            else:
                w = p * pl.reciprocal(denom, approx=True)  # EUP, fast path

            out_h = jnp.dot(w.astype(jnp.bfloat16), v,
                            preferred_element_type=jnp.float32)  # (T, hd) f32
            o_ref[0, :, c0:c0 + head_dim] = out_h.astype(o_ref.dtype)

    return kernel


def _attention_vmem_bytes(T, D, num_heads, return_weights):
    qkv_blk = T * 3 * D * 2          # bf16 input block
    out_blk = T * D * 2              # bf16 context block
    w_blk = num_heads * T * T * 4 if return_weights else 0
    interm = 4 * T * T * 4           # per-head f32 scores/probs live at once (loose bound)
    return 2 * (qkv_blk + out_blk + w_blk) + interm  # x2: double-buffered blocks


def pallas_attention(qkv, num_heads, head_dim, *, return_weights=True):
    """qkv: (B, T, 3*D) bf16 -> (ctx (B, T, D) bf16, weights (B, H, T, T) f32 or None)."""
    B, T, threeD = qkv.shape
    D = num_heads * head_dim
    assert threeD == 3 * D

    vmem_limit = _vmem_limit_bytes()
    if _attention_vmem_bytes(T, D, num_heads, return_weights) > vmem_limit:
        # TODO(synk): flash-style KV-tiled online softmax for long T / large H*T*T.
        raise NotImplementedError(
            "attention working set exceeds the VMEM budget; flash-style KV tiling "
            "is not implemented yet")

    scale = 1.0 / math.sqrt(head_dim)

    out_shape = [jax.ShapeDtypeStruct((B, T, D), jnp.bfloat16)]
    out_specs = [pl.BlockSpec((1, T, D), lambda b: (b, 0, 0))]  # lane-dense (T, D) writeback
    bytes_accessed = B * T * 3 * D * 2 + B * T * D * 2
    if return_weights:
        out_shape.append(jax.ShapeDtypeStruct((B, num_heads, T, T), jnp.float32))
        out_specs.append(pl.BlockSpec((1, num_heads, T, T), lambda b: (b, 0, 0, 0)))
        bytes_accessed += B * num_heads * T * T * 4

    ce = pl.CostEstimate(flops=4 * B * num_heads * T * T * head_dim,
                         transcendentals=B * num_heads * T * T,
                         bytes_accessed=bytes_accessed)

    res = pl.pallas_call(
        _make_attention_kernel(num_heads, head_dim, scale, return_weights),
        out_shape=out_shape,
        grid_spec=pltpu.PrefetchScalarGridSpec(
            num_scalar_prefetch=0,
            grid=(B,),
            in_specs=[pl.BlockSpec((1, T, 3 * D), lambda b: (b, 0, 0))],
            out_specs=out_specs),
        compiler_params=pltpu.CompilerParams(
            dimension_semantics=("parallel",),   # batch axis shards across TCs on v7x
            vmem_limit_bytes=vmem_limit),
        cost_estimate=ce,
    )(qkv)

    ctx = res[0]
    weights = res[1] if return_weights else None
    return ctx, weights


# ---------------------------------------------------------------------------
# Module
# ---------------------------------------------------------------------------

class MultiHeadAttention:
    """JAX/Pallas port of the PyTorch MultiHeadAttention module (mask=None path)."""

    def __init__(self, d_model, num_heads, key):
        self.d_model = d_model
        self.num_heads = num_heads
        self.head_dim = d_model // num_heads
        k1, k2, k3, k4 = jax.random.split(key, 4)
        bound = 1.0 / math.sqrt(d_model)
        # Canonical f32 params (y = x @ W + b); bf16 copies are what the kernels consume.
        self.qkv_w = jax.random.uniform(k1, (d_model, 3 * d_model), jnp.float32, -bound, bound)
        self.qkv_b = jax.random.uniform(k2, (3 * d_model,), jnp.float32, -bound, bound)
        self.out_w = jax.random.uniform(k3, (d_model, d_model), jnp.float32, -bound, bound)
        self.out_b = jax.random.uniform(k4, (d_model,), jnp.float32, -bound, bound)
        self.qkv_w_bf16 = self.qkv_w.astype(jnp.bfloat16)
        self.out_w_bf16 = self.out_w.astype(jnp.bfloat16)

    def __call__(self, x, mask=None, need_weights=True):
        if mask is not None:
            # TODO(synk): mask branch of scaled_dot_product_attention not implemented.
            raise NotImplementedError("mask is not supported by the Pallas kernel yet")
        B, T, D = x.shape
        H, hd = self.num_heads, self.head_dim

        # bf16 activations end-to-end (cast once)
        x_bf16 = x.astype(jnp.bfloat16)

        # qkv projection (tiled Pallas matmul, bf16 out) — (B*T, 3D)
        qkv = pallas_linear(x_bf16.reshape(B * T, D), self.qkv_w_bf16, self.qkv_b,
                            out_dtype=jnp.bfloat16)
        qkv = qkv.reshape(B, T, 3 * D)  # free reshape, no transpose

        # attention (Pallas kernel, head split fused, lane-dense (B,T,D) ctx output)
        ctx, weights = pallas_attention(qkv, H, hd, return_weights=need_weights)

        # output projection (tiled Pallas matmul, f32 out)
        y = pallas_linear(ctx.reshape(B * T, D), self.out_w_bf16, self.out_b,
                          out_dtype=jnp.float32).reshape(B, T, D)
        return y, weights


# ---------------------------------------------------------------------------
# Reference (plain JAX, f32 weights) for sanity checking
# ---------------------------------------------------------------------------

def _reference_forward(mha, x):
    B, T, D = x.shape
    H, hd = mha.num_heads, mha.head_dim
    qkv = x.reshape(B * T, D) @ mha.qkv_w + mha.qkv_b
    qkv = qkv.reshape(B, T, 3, H, hd).transpose(2, 0, 3, 1, 4)
    q, k, v = qkv[0], qkv[1], qkv[2]
    scores = jnp.einsum("bhqd,bhkd->bhqk", q, k) / math.sqrt(hd)
    w = jax.nn.softmax(scores, axis=-1)
    out = jnp.einsum("bhqk,bhkd->bhqd", w, v)
    out = out.transpose(0, 2, 1, 3).reshape(B, T, D)
    y = out.reshape(B * T, D) @ mha.out_w + mha.out_b
    return y.reshape(B, T, D), w


if __name__ == "__main__":
    key = jax.random.PRNGKey(0)
    k_param, k_x = jax.random.split(key)

    B, T, D, H = 2, 8, 32, 4
    mha = MultiHeadAttention(d_model=D, num_heads=H, key=k_param)
    x = jax.random.normal(k_x, (B, T, D), dtype=jnp.float32)

    y, weights = mha(x)
    y = jax.block_until_ready(y)
    weights = jax.block_until_ready(weights)

    y_ref, w_expected = _reference_forward(mha, x)
    assert y.shape == (B, T, D) and weights.shape == (B, H, T, T)
    # bf16 activations/matmul inputs => looser tolerances than pure f32
    assert jnp.allclose(y, y_ref, atol=5e-2, rtol=5e-2)
    assert jnp.allclose(weights, w_expected, atol=2e-2, rtol=3e-2)
    # exact-division weights path: rows sum to 1 (PyTorch softmax parity)
    assert jnp.allclose(jnp.sum(weights, axis=-1), 1.0, atol=1e-5)

    # fast path: skip the O(T^2) weights writeback; softmax normalization on the EUP
    y2, w2 = mha(x, need_weights=False)
    y2 = jax.block_until_ready(y2)
    assert w2 is None
    assert jnp.allclose(y2, y_ref, atol=5e-2, rtol=5e-2)

    print("KERNEL_OK")
</pallas_src>

<mosaic_0001>
module attributes {stable_mosaic.version = 11 : i64} {
  func.func @_linear_kernel(%arg0: i32, %arg1: i32, %arg2: i32, %arg3: memref<16x32xbf16, #tpu.memory_space<vmem>>, %arg4: memref<32x96xbf16, #tpu.memory_space<vmem>>, %arg5: memref<1x96xf32, #tpu.memory_space<vmem>>, %arg6: memref<16x96xbf16, #tpu.memory_space<vmem>>, %arg7: memref<16x96xf32, #tpu.memory_space<vmem>>) attributes {dimension_semantics = [#tpu.dimension_semantics<parallel>, #tpu.dimension_semantics<parallel>, #tpu.dimension_semantics<arbitrary>], iteration_bounds = array<i64: 1, 1, 1>, scalar_prefetch = 0 : i64, scratch_operands = 1 : i64, tpu.core_type = #tpu.core_type<tc>, window_params = [{transform_indices = @transform_0, window_bounds = array<i64: 16, 32>}, {transform_indices = @transform_1, window_bounds = array<i64: 32, 96>}, {transform_indices = @transform_2, window_bounds = array<i64: 1, 96>}, {transform_indices = @transform_3, window_bounds = array<i64: 16, 96>}]} {
    %c0_i32 = arith.constant 0 : i32
    %0 = arith.cmpi eq, %arg2, %c0_i32 : i32
    %1 = arith.extui %0 : i1 to i32
    %c0_i32_0 = arith.constant 0 : i32
    %2 = arith.cmpi ne, %1, %c0_i32_0 : i32
    scf.if %2 {
      %cst_10 = arith.constant 0.000000e+00 : f32
      %12 = vector.broadcast %cst_10 : f32 to vector<16x96xf32>
      %c0_11 = arith.constant 0 : index
      %c0_12 = arith.constant 0 : index
      %13 = vector.load %arg7[%c0_11, %c0_12] : memref<16x96xf32, #tpu.memory_space<vmem>>, vector<16x96xf32>
      tpu.vector_store %arg7[%c0_11, %c0_12], %12 {strides = array<i32>} : memref<16x96xf32, #tpu.memory_space<vmem>>, vector<16x96xf32>,
    } else {
    }
    %c0 = arith.constant 0 : index
    %c0_1 = arith.constant 0 : index
    %3 = vector.load %arg7[%c0, %c0_1] : memref<16x96xf32, #tpu.memory_space<vmem>>, vector<16x96xf32>
    %c0_2 = arith.constant 0 : index
    %c0_3 = arith.constant 0 : index
    %4 = vector.load %arg3[%c0_2, %c0_3] : memref<16x32xbf16, #tpu.memory_space<vmem>>, vector<16x32xbf16>
    %c0_4 = arith.constant 0 : index
    %c0_5 = arith.constant 0 : index
    %5 = vector.load %arg4[%c0_4, %c0_5] : memref<32x96xbf16, #tpu.memory_space<vmem>>, vector<32x96xbf16>
    %cst = arith.constant dense<0.000000e+00> : vector<16x96xf32>
    %6 = tpu.matmul %4, %5, %cst {dimension_numbers = #tpu.dot_dimension_numbers<[1], [0], [0], [1], [0, 0, 1, 1], [], []>} : vector<16x32xbf16>, vector<32x96xbf16>, vector<16x96xf32> -> vector<16x96xf32>
    %7 = arith.addf %3, %6 : vector<16x96xf32>
    %c0_6 = arith.constant 0 : index
    %c0_7 = arith.constant 0 : index
    %8 = vector.load %arg7[%c0_6, %c0_7] : memref<16x96xf32, #tpu.memory_space<vmem>>, vector<16x96xf32>
    tpu.vector_store %arg7[%c0_6, %c0_7], %7 {strides = array<i32>} : memref<16x96xf32, #tpu.memory_space<vmem>>, vector<16x96xf32>,
    %c0_i32_8 = arith.constant 0 : i32
    %9 = arith.cmpi eq, %arg2, %c0_i32_8 : i32
    %10 = arith.extui %9 : i1 to i32
    %c0_i32_9 = arith.constant 0 : i32
    %11 = arith.cmpi ne, %10, %c0_i32_9 : i32
    scf.if %11 {
      %c0_10 = arith.constant 0 : index
      %c0_11 = arith.constant 0 : index
      %12 = vector.load %arg7[%c0_10, %c0_11] : memref<16x96xf32, #tpu.memory_space<vmem>>, vector<16x96xf32>
      %c0_12 = arith.constant 0 : index
      %c0_13 = arith.constant 0 : index
      %13 = vector.load %arg5[%c0_12, %c0_13] : memref<1x96xf32, #tpu.memory_space<vmem>>, vector<1x96xf32>
      %14 = vector.broadcast %13 : vector<1x96xf32> to vector<16x96xf32>
      %15 = arith.addf %12, %14 : vector<16x96xf32>
      %16 = arith.truncf %15 : vector<16x96xf32> to vector<16x96xbf16>
      %c0_14 = arith.constant 0 : index
      %c0_15 = arith.constant 0 : index
      %17 = vector.load %arg6[%c0_14, %c0_15] : memref<16x96xbf16, #tpu.memory_space<vmem>>, vector<16x96xbf16>
      tpu.vector_store %arg6[%c0_14, %c0_15], %16 {strides = array<i32>} : memref<16x96xbf16, #tpu.memory_space<vmem>>, vector<16x96xbf16>,
    } else {
    }
    return
  }
  func.func @transform_0(%arg0: i32, %arg1: i32, %arg2: i32) -> (i32, i32) {
    %c0_i32 = arith.constant 0 : i32
    return %arg0, %arg2 : i32, i32
  }
  func.func @transform_1(%arg0: i32, %arg1: i32, %arg2: i32) -> (i32, i32) {
    %c0_i32 = arith.constant 0 : i32
    return %arg2, %arg1 : i32, i32
  }
  func.func @transform_2(%arg0: i32, %arg1: i32, %arg2: i32) -> (i32, i32) {
    %c0_i32 = arith.constant 0 : i32
    %c0_i32_0 = arith.constant 0 : i32
    return %c0_i32, %arg1 : i32, i32
  }
  func.func @transform_3(%arg0: i32, %arg1: i32, %arg2: i32) -> (i32, i32) {
    %c0_i32 = arith.constant 0 : i32
    return %arg0, %arg1 : i32, i32
  }
}

</mosaic_0001>

<llo_original>
// kernel: tpu_custom_call.1
$region0: #{tpu_custom_call.1}
  #allocation0 [shape = 'u32[]', space=smem, size = 0x4, offset = 0x4, fixed_abs, tag = 'smem constant byte address 0x4 - core index']
  #allocation1 [shape = 'u32[144,128]{1,0:T(1,128)}', space=vmem, size = 0x12000, scoped, tag = 'internal scratch']
  #allocation2 [shape = 'f32[16,96]{1,0:T(8,128)}', space=vmem, size = 0x2000, scoped, tag = 'scratch operand']
  %s0 = inlined_call_operand.hbm [shape: bf16[16,32], index: 0, kind: input, shape index: {}]
  %s1 = inlined_call_operand.hbm [shape: bf16[32,96], index: 1, kind: input, shape index: {}]
  %s2 = inlined_call_operand.vmem [shape: f32[1,96], index: 2, kind: input, shape index: {}]
  %s3 = inlined_call_operand.hbm [shape: bf16[16,96], index: 3, kind: output, shape index: {}]
  %s4 = sld [smem:[#allocation0]]
  $region38: #{tpu_custom_call.1} parent=0
    _
  %s6 = ssub.s32 1, %s4
  %s7 = scalar_select 0, %s6, %s4
  $region1: #{tpu_custom_call.1} parent=0
    #allocation3 [shape = 'u8[4096]{0}', space=vmem, size = 0x1000, scoped, tag = 'input window, operand 0, single buffered']
    #allocation4 [shape = 's32[1]{0}', space=sflag, size = 0x4, scoped, tag = 'scoped memory for tpu_custom_call.1']
    #allocation5 [shape = 's32[1]{0}', space=sflag, size = 0x4, scoped, tag = 'scoped memory for tpu_custom_call.1']
    #allocation6 [shape = 'u8[8192]{0}', space=vmem, size = 0x2000, scoped, tag = 'input window, operand 1, single buffered']
    #allocation7 [shape = 's32[1]{0}', space=sflag, size = 0x4, scoped, tag = 'scoped memory for tpu_custom_call.1']
    #allocation8 [shape = 'u8[4096]{0}', space=vmem, size = 0x1000, scoped, tag = 'output window, operand 0, single buffered']
    %8 = vsyncpa [#allocation4], 0
    %9 = vsyncpa [#allocation7], 0
    %10 = vsyncpa [#allocation5], 0
    // Predicated region
    $region2: #{tpu_custom_call.1} parent=1 // pred_check
      _
    $region3: #{tpu_custom_call.1} parent=1 // pred_check_branch
      %12 = sbr.rel (0) target = $region5
    $region4: #{tpu_custom_call.1} parent=1 // pred_region
      %s14 = ssub.s32 128, 128
      %15 = vsyncadd [#allocation4], %s14
      %s16 = sshll.u32 [#allocation3], 4
      %s17 = int_to_ptr.vmem [resolvable:$true] %s16
      %22 = dma.hbm_to_vmem [thread:$0]  %s0, 128, %s17, [#allocation4], 64, 64, 4
    $region5: #{tpu_custom_call.1} parent=1 // pred_fallthru
      _
    // Predicated region
    $region6: #{tpu_custom_call.1} parent=1 // pred_check
      _
    $region7: #{tpu_custom_call.1} parent=1 // pred_check_branch
      %24 = sbr.rel (0) target = $region9
    $region8: #{tpu_custom_call.1} parent=1 // pred_region
      %s26 = ssub.s32 256, 256
      %27 = vsyncadd [#allocation7], %s26
      %s28 = sshll.u32 [#allocation6], 4
      %s29 = int_to_ptr.vmem [resolvable:$true] %s28
      %34 = dma.hbm_to_vmem [thread:$0]  %s1, 256, %s29, [#allocation7], 64, 64, 4
    $region9: #{tpu_custom_call.1} parent=1 // pred_fallthru
      _
    // Predicated region
    $region10: #{tpu_custom_call.1} parent=1 // pred_check
      _
    $region11: #{tpu_custom_call.1} parent=1 // pred_check_branch
      %36 = sbr.rel (0) target = $region13
    $region12: #{tpu_custom_call.1} parent=1 // pred_region
      _
    $region13: #{tpu_custom_call.1} parent=1 // pred_fallthru
      _
    // Predicated region
    $region14: #{tpu_custom_call.1} parent=1 // pred_check
      _
    $region15: #{tpu_custom_call.1} parent=1 // pred_check_branch
      %38 = sbr.rel (0) target = $region17
    $region16: #{tpu_custom_call.1} parent=1 // pred_region
      %39 = dma.done [#allocation4], 128
    $region17: #{tpu_custom_call.1} parent=1 // pred_fallthru
      _
    // Predicated region
    $region18: #{tpu_custom_call.1} parent=1 // pred_check
      _
    $region19: #{tpu_custom_call.1} parent=1 // pred_check_branch
      %41 = sbr.rel (0) target = $region21
    $region20: #{tpu_custom_call.1} parent=1 // pred_region
      %42 = dma.done [#allocation7], 256
    $region21: #{tpu_custom_call.1} parent=1 // pred_fallthru
      _
    %p44 = scmp.eq.s32.totalorder 0, 0
    // Predicated region
    $region22: #{tpu_custom_call.1} parent=1 // pred_check
      %p45 = pneg %p44
    $region23: #{tpu_custom_call.1} parent=1 // pred_check_branch
      %47 = sbr.rel (%p45) target = $region25
    $region24: #{tpu_custom_call.1} parent=1 // pred_region
      %vm48 = vcmask 785408
      %49 = vst.msk [vmem:[#allocation2] sm:$0xff] %vm48, 0.0
      %50 = vst.msk [vmem:[#allocation2 + $0x8] sm:$0xff] %vm48, 0.0
    $region25: #{tpu_custom_call.1} parent=1 // pred_fallthru
      _
    %v51 = vld [vmem:[#allocation2] sm:$0xff]
    %v52 = vld [vmem:[#allocation2 + $0x8] sm:$0xff]
    %v53 = vld [vmem:[#allocation3] sm:$0xf]
    %v54 = vld [vmem:[#allocation3 + $0x4] sm:$0xf]
    %v55 = vld [vmem:[#allocation6] sm:$0xf]
    %v56 = vld [vmem:[#allocation6 + $0x4] sm:$0xf]
    %v57 = vld [vmem:[#allocation6 + $0x8] sm:$0xf]
    %v58 = vld [vmem:[#allocation6 + $0xc] sm:$0xf]
    %v61 = vunpack.c.l.b16 %v53
    %v62 = vunpack.c.l.b16 %v54
    %v63 = vpack.c.b16 %v62, %v61
    %v68 = vunpack.c.l.b16 %v55
    %v69 = vunpack.c.l.b16 %v56
    %v70 = vunpack.c.l.b16 %v57
    %v71 = vunpack.c.l.b16 %v58
    %v72 = vpack.c.b16 %v69, %v68
    %v73 = vpack.c.b16 %v71, %v70
    %vm76 = vcmask 261120
    %v78 = vsel %vm76, %v63, 0
    %80 = vmatprep.subr.bf16.mxu0 0
    %81 = vmatpush1.bf16.msra.mxu0 0
    %82 = vmatprep.subr.bf16.mxu0 0
    %83 = vmatpush1.bf16.msra.mxu0 0
    %84 = vmatprep.subr.bf16.mxu0 0
    %85 = vmatpush1.bf16.msra.mxu0 0
    %86 = vmatprep.subr.bf16.mxu0 0
    %87 = vmatpush1.bf16.msra.mxu0 0
    %88 = vmatprep.subr.bf16.mxu0 0
    %89 = vmatpush1.bf16.msra.mxu0 0
    %90 = vmatprep.subr.bf16.mxu0 0
    %91 = vmatpush1.bf16.msra.mxu0 0
    %92 = vmatprep.subr.bf16.mxu0 0
    %93 = vmatpush1.bf16.msra.mxu0 %v73
    %94 = vmatprep.subr.bf16.mxu0 0
    %95 = vmatpush1.bf16.msra.mxu0 %v72
    %96 = vmatprep.subr.bf16.mxu0 0
    %97 = vmatpush2.bf16.msra.mxu0 0
    %98 = vmatprep.subr.bf16.mxu0 0
    %99 = vmatpush2.bf16.msra.mxu0 0
    %100 = vmatprep.subr.bf16.mxu0 0
    %101 = vmatpush2.bf16.msra.mxu0 0
    %102 = vmatprep.subr.bf16.mxu0 0
    %103 = vmatpush2.bf16.msra.mxu0 0
    %104 = vmatprep.subr.bf16.mxu0 0
    %105 = vmatpush2.bf16.msra.mxu0 0
    %106 = vmatprep.subr.bf16.mxu0 0
    %107 = vmatpush2.bf16.msra.mxu0 0
    %108 = vmatprep.subr.bf16.mxu0 0
    %109 = vmatpush2.bf16.msra.mxu0 0
    %110 = vmatprep.subr.bf16.mxu0 0
    %111 = vmatpush2.bf16.msra.mxu0 0
    %112 = vmatprep.mubr.bf16.mxu0 0
    %113 = vmatmul.mubr.bf16.gmra.mxu0 %v78
    %v114 = vpop.f32.mrf.mxu0
    %v115 = vadd.f32 0.0, %v114
    %v116 = vpop.f32.mrf.mxu0
    %v117 = vpop.f32.mrf.mxu0
    %v118 = vadd.f32 0.0, %v117
    %v119 = vpop.f32.mrf.mxu0
    %120 = vdwg.mxu0
    %v121 = vadd.f32 %v51, %v115
    %v122 = vadd.f32 %v52, %v118
    %vm123 = vcmask 785408
    %124 = vst.msk [vmem:[#allocation2] sm:$0xff] %vm123, %v121
    %125 = vst.msk [vmem:[#allocation2 + $0x8] sm:$0xff] %vm123, %v122
    // Predicated region
    $region26: #{tpu_custom_call.1} parent=1 // pred_check
      %p126 = pneg %p44
    $region27: #{tpu_custom_call.1} parent=1 // pred_check_branch
      %128 = sbr.rel (%p126) target = $region29
    $region28: #{tpu_custom_call.1} parent=1 // pred_region
      %v129 = vld [vmem:[#allocation2] sm:$0xff]
      %v130 = vld [vmem:[#allocation2 + $0x8] sm:$0xff]
      %v131 = vld [vmem:[%s2] sm:$0x1]
      %v133 = vlaneseq
      %v134 = vshrl.u32 %v133, 7
      %v135 = vsub.s32 0, %v134
      %v136 = vrot.slane %v131, %v135
      %v138 = vadd.f32 %v129, %v136
      %v139 = vadd.f32 %v130, %v136
      %v140 = vpack.c.bf16 %v139, %v138
      %v142 = vunpack.c.l.b16 %v140
      %v143 = vunpack.c.h.b16 %v140
      %v144 = vpack.c.b16 %v142, %v142
      %v145 = vpack.c.b16 %v143, %v143
      %vm148 = vcmask 781312
      %149 = vst.msk [vmem:[#allocation8] sm:$0xf] %vm148, %v144
      %150 = vst.msk [vmem:[#allocation8 + $0x4] sm:$0xf] %vm148, %v145
    $region29: #{tpu_custom_call.1} parent=1 // pred_fallthru
      _
    // Predicated region
    $region30: #{tpu_custom_call.1} parent=1 // pred_check
      _
    $region31: #{tpu_custom_call.1} parent=1 // pred_check_branch
      %152 = sbr.rel (0) target = $region33
    $region32: #{tpu_custom_call.1} parent=1 // pred_region
      %s154 = ssub.s32 128, 128
      %155 = vsyncadd [#allocation5], %s154
      %s156 = sshll.u32 [#allocation8], 4
      %s157 = int_to_ptr.vmem [resolvable:$true] %s156
      %162 = dma.vmem_to_hbm [thread:$0]  %s157, 128, %s3, [#allocation5], 64, 64, 4
    $region33: #{tpu_custom_call.1} parent=1 // pred_fallthru
      _
    // Predicated region
    $region34: #{tpu_custom_call.1} parent=1 // pred_check
      _
    $region35: #{tpu_custom_call.1} parent=1 // pred_check_branch
      %164 = sbr.rel (0) target = $region37
    $region36: #{tpu_custom_call.1} parent=1 // pred_region
      %165 = dma.done [#allocation5], 128
    $region37: #{tpu_custom_call.1} parent=1 // pred_fallthru
      _
    %166 = vsyncpa [#allocation4], 1
    %167 = vsyncpa [#allocation7], 1
    %168 = vsyncpa [#allocation5], 1

</llo_original>
